<compile_context>
chip_gen: v6e
topology: v6e:2x2x1
jax: 0.10.0
libtpu: 0.0.40
codegen_flags: <defaults>
</compile_context>

<pallas_src>
import functools

import jax
import jax.numpy as jnp
from jax.experimental import pallas as pl
from jax.experimental.pallas import tpu as pltpu

PENALTY_FACTOR = 10.0   # config['ltuner']['penalty_factor']
MEM_BUDGET_IDX = 4      # self.lcm_schema.feat_cols().index('mem_budget')


def _loss_kernel(x_ref, w1_ref, w1bpe_ref, b1_ref, w2_ref, b2_ref, out_ref,
                 *, dl, mem_idx, penalty_factor, total_b, tb):
    pid = pl.program_id(0)

    @pl.when(pid == 0)
    def _():
        out_ref[...] = jnp.zeros_like(out_ref)

    x = x_ref[...].astype(jnp.float32)           # [TB, F] = [label | bpe | cat]
    bpe = x[:, dl:dl + 1]                        # [TB, 1] (unclamped tuner bpe)
    mem_budget = x[:, mem_idx:mem_idx + 1]       # [TB, 1]

    # ---- calc_mem_penalty (second masked write overrides the first, as in torch) ----
    penalty = jnp.where(bpe >= mem_budget, penalty_factor * (bpe - mem_budget), 0.0)
    penalty = jnp.where(bpe < 0.0, penalty_factor * (0.0 - bpe), penalty)
    bpe_c = jnp.minimum(bpe, mem_budget)
    bpe_c = jnp.maximum(bpe_c, 0.0)

    # ---- LCM forward: one MXU contraction + rank-1 bpe-column correction ----
    #   concat([label, bpe_c, cat]) @ W1 == x @ W1 + (bpe_c - bpe) * W1[bpe_row]
    h = jnp.dot(x, w1_ref[...], preferred_element_type=jnp.float32)       # [TB, H]
    h = h + (bpe_c - bpe) * w1bpe_ref[...]                                # VPU outer prod
    h = jnp.maximum(h + b1_ref[...], 0.0)
    out = jnp.dot(h, w2_ref[...], preferred_element_type=jnp.float32) + b2_ref[...]

    sumsq = jnp.sum(out * out, axis=-1, keepdims=True)                    # [TB, 1]

    # Mask rows that are zero-padding beyond the true batch size.
    row = pid * tb + jax.lax.broadcasted_iota(jnp.int32, (tb, 1), 0)
    contrib = jnp.where(row < total_b, sumsq + penalty, 0.0)

    out_ref[...] += jnp.sum(contrib, keepdims=True)                       # (1,1) accum

    @pl.when(pid == pl.num_programs(0) - 1)
    def _():
        # torch: mean over the [B] + [B,1] broadcast == (sum(sumsq)+sum(pen)) / B
        out_ref[...] = out_ref[...] * (1.0 / total_b)


def learned_cost_model_loss(pred, label, w1, b1, w2, b2,
                            penalty_factor=PENALTY_FACTOR,
                            mem_idx=MEM_BUDGET_IDX,
                            block_b=128):
    B, dl = label.shape
    f = dl + pred.shape[1]          # DL + 1 + K  (== w1.shape[0])
    h = w1.shape[1]
    o = w2.shape[1]

    # Layout plumbing on the host side (cheap XLA ops):
    #   x = [label | bpe | cat]  -- the exact LCM input layout (bpe still unclamped).
    x = jnp.concatenate([label, pred], axis=-1).astype(jnp.float32)
    w1_bpe = jax.lax.slice_in_dim(w1, dl, dl + 1, axis=0)   # [1, H], sliced host-side

    # Pad batch to a multiple of the batch tile (padded rows masked in-kernel).
    tb = int(block_b)
    pb = ((B + tb - 1) // tb) * tb
    if pb != B:
        x = jnp.pad(x, ((0, pb - B), (0, 0)))
    grid = (pb // tb,)

    kernel = functools.partial(
        _loss_kernel, dl=int(dl), mem_idx=int(mem_idx),
        penalty_factor=float(penalty_factor), total_b=int(B), tb=tb)

    out = pl.pallas_call(
        kernel,
        out_shape=jax.ShapeDtypeStruct((1, 1), jnp.float32),
        grid_spec=pltpu.PrefetchScalarGridSpec(
            num_scalar_prefetch=0,
            grid=grid,
            in_specs=[
                pl.BlockSpec((tb, f), lambda i: (i, 0)),   # x: batch-tiled, full width
                pl.BlockSpec((f, h), lambda i: (0, 0)),    # w1: resident across grid
                pl.BlockSpec((1, h), lambda i: (0, 0)),    # w1 bpe row: resident
                pl.BlockSpec((1, h), lambda i: (0, 0)),    # b1: resident
                pl.BlockSpec((h, o), lambda i: (0, 0)),    # w2: resident
                pl.BlockSpec((1, o), lambda i: (0, 0)),    # b2: resident
            ],
            out_specs=pl.BlockSpec((1, 1), lambda i: (0, 0)),
        ),
        compiler_params=pltpu.CompilerParams(
            # Output is accumulated across batch tiles -> reduction axis.
            dimension_semantics=("arbitrary",),
        ),
    )(x, w1, w1_bpe, b1, w2, b2)
    return out[0, 0]


if __name__ == "__main__":
    # Small shapes consistent with the forward pass:
    #   B = batch of tuner outputs (deliberately NOT a multiple of the 128-row tile,
    #   to exercise the padding/masking path), DL = # label features,
    #   K = # categorical feats, H = LCM hidden width, O = # cost-model outputs.
    B, DL, K, H, O = 200, 8, 7, 32, 4
    F = DL + 1 + K

    key = jax.random.PRNGKey(0)
    kp, kl, k1, k2, k3, k4 = jax.random.split(key, 6)
    pred = jax.random.normal(kp, (B, 1 + K), dtype=jnp.float32)
    label = jax.random.uniform(kl, (B, DL), dtype=jnp.float32)

    # Deterministic synthetic LCM parameters (no checkpoint loading).
    w1 = 0.1 * jax.random.normal(k1, (F, H), dtype=jnp.float32)
    b1 = 0.1 * jax.random.normal(k2, (1, H), dtype=jnp.float32)
    w2 = 0.1 * jax.random.normal(k3, (H, O), dtype=jnp.float32)
    b2 = 0.1 * jax.random.normal(k4, (1, O), dtype=jnp.float32)

    loss = jax.jit(learned_cost_model_loss)(pred, label, w1, b1, w2, b2)
    jax.block_until_ready(loss)

    # Pure-JAX reference mirroring the torch code (incl. the [B]+[B,1] broadcast mean).
    bpe, cat = pred[:, 0:1], pred[:, 1:]
    mb = label[:, MEM_BUDGET_IDX:MEM_BUDGET_IDX + 1]
    pen = jnp.where(bpe >= mb, PENALTY_FACTOR * (bpe - mb), 0.0)
    pen = jnp.where(bpe < 0, PENALTY_FACTOR * (0.0 - bpe), pen)
    bpe_c = jnp.where(bpe > mb, mb, bpe)
    bpe_c = jnp.where(bpe_c < 0, 0.0, bpe_c)
    inp = jnp.concatenate([label, bpe_c, cat], axis=-1)
    o = jnp.maximum(inp @ w1 + b1, 0.0) @ w2 + b2
    ref = jnp.mean(jnp.sum(o * o, axis=-1) + pen)   # broadcasts to [B, B], then mean
    assert jnp.allclose(loss, ref, rtol=1e-4, atol=1e-4), (loss, ref)

    print("KERNEL_OK")
</pallas_src>

<mosaic_0001>
module attributes {stable_mosaic.version = 11 : i64} {
  func.func @_loss_kernel(%arg0: i32, %arg1: memref<128x16xf32, #tpu.memory_space<vmem>>, %arg2: memref<16x32xf32, #tpu.memory_space<vmem>>, %arg3: memref<1x32xf32, #tpu.memory_space<vmem>>, %arg4: memref<1x32xf32, #tpu.memory_space<vmem>>, %arg5: memref<32x4xf32, #tpu.memory_space<vmem>>, %arg6: memref<1x4xf32, #tpu.memory_space<vmem>>, %arg7: memref<1x1xf32, #tpu.memory_space<vmem>>) attributes {dimension_semantics = [#tpu.dimension_semantics<arbitrary>], iteration_bounds = array<i64: 2>, scalar_prefetch = 0 : i64, scratch_operands = 0 : i64, tpu.core_type = #tpu.core_type<tc>, window_params = [{transform_indices = @transform_0, window_bounds = array<i64: 128, 16>}, {pipeline_mode = #tpu.pipeline_mode<synchronous>, transform_indices = @transform_1, window_bounds = array<i64: 16, 32>}, {pipeline_mode = #tpu.pipeline_mode<synchronous>, transform_indices = @transform_2, window_bounds = array<i64: 1, 32>}, {pipeline_mode = #tpu.pipeline_mode<synchronous>, transform_indices = @transform_3, window_bounds = array<i64: 1, 32>}, {pipeline_mode = #tpu.pipeline_mode<synchronous>, transform_indices = @transform_4, window_bounds = array<i64: 32, 4>}, {pipeline_mode = #tpu.pipeline_mode<synchronous>, transform_indices = @transform_5, window_bounds = array<i64: 1, 4>}, {pipeline_mode = #tpu.pipeline_mode<synchronous>, transform_indices = @transform_6, window_bounds = array<i64: 1, 1>}]} {
    %c0_i32 = arith.constant 0 : i32
    %0 = arith.cmpi eq, %arg0, %c0_i32 : i32
    %1 = arith.extui %0 : i1 to i32
    %c0_i32_0 = arith.constant 0 : i32
    %2 = arith.cmpi ne, %1, %c0_i32_0 : i32
    scf.if %2 {
      %cst_28 = arith.constant 0.000000e+00 : f32
      %63 = vector.broadcast %cst_28 : f32 to vector<1x1xf32>
      %c0_29 = arith.constant 0 : index
      %c0_30 = arith.constant 0 : index
      %64 = vector.load %arg7[%c0_29, %c0_30] : memref<1x1xf32, #tpu.memory_space<vmem>>, vector<1x1xf32>
      tpu.vector_store %arg7[%c0_29, %c0_30], %63 {strides = array<i32>} : memref<1x1xf32, #tpu.memory_space<vmem>>, vector<1x1xf32>,
    } else {
    }
    %c0 = arith.constant 0 : index
    %c0_1 = arith.constant 0 : index
    %3 = vector.load %arg1[%c0, %c0_1] : memref<128x16xf32, #tpu.memory_space<vmem>>, vector<128x16xf32>
    %4 = vector.extract_strided_slice %3 {offsets = [0, 8], sizes = [128, 1], strides = [1, 1]} : vector<128x16xf32> to vector<128x1xf32>
    %5 = vector.extract_strided_slice %3 {offsets = [0, 4], sizes = [128, 1], strides = [1, 1]} : vector<128x16xf32> to vector<128x1xf32>
    %6 = arith.cmpf oge, %4, %5 : vector<128x1xf32>
    %7 = arith.subf %4, %5 : vector<128x1xf32>
    %cst = arith.constant 1.000000e+01 : f32
    %8 = vector.broadcast %cst : f32 to vector<128x1xf32>
    %9 = arith.mulf %8, %7 : vector<128x1xf32>
    %cst_2 = arith.constant 0.000000e+00 : f32
    %10 = vector.broadcast %cst_2 : f32 to vector<128x1xf32>
    %11 = arith.select %6, %9, %10 : vector<128x1xi1>, vector<128x1xf32>
    %cst_3 = arith.constant 0.000000e+00 : f32
    %12 = vector.broadcast %cst_3 : f32 to vector<128x1xf32>
    %13 = arith.cmpf olt, %4, %12 : vector<128x1xf32>
    %cst_4 = arith.constant 0.000000e+00 : f32
    %14 = vector.broadcast %cst_4 : f32 to vector<128x1xf32>
    %15 = arith.subf %14, %4 : vector<128x1xf32>
    %cst_5 = arith.constant 1.000000e+01 : f32
    %16 = vector.broadcast %cst_5 : f32 to vector<128x1xf32>
    %17 = arith.mulf %16, %15 : vector<128x1xf32>
    %18 = arith.select %13, %17, %11 : vector<128x1xi1>, vector<128x1xf32>
    %19 = arith.minimumf %4, %5 : vector<128x1xf32>
    %cst_6 = arith.constant 0.000000e+00 : f32
    %20 = vector.broadcast %cst_6 : f32 to vector<128x1xf32>
    %21 = arith.maximumf %19, %20 : vector<128x1xf32>
    %c0_7 = arith.constant 0 : index
    %c0_8 = arith.constant 0 : index
    %22 = vector.load %arg2[%c0_7, %c0_8] : memref<16x32xf32, #tpu.memory_space<vmem>>, vector<16x32xf32>
    %cst_9 = arith.constant dense<0.000000e+00> : vector<128x32xf32>
    %23 = tpu.matmul %3, %22, %cst_9 {dimension_numbers = #tpu.dot_dimension_numbers<[1], [0], [0], [1], [0, 0, 1, 1], [], []>} : vector<128x16xf32>, vector<16x32xf32>, vector<128x32xf32> -> vector<128x32xf32>
    %24 = arith.subf %21, %4 : vector<128x1xf32>
    %c0_10 = arith.constant 0 : index
    %c0_11 = arith.constant 0 : index
    %25 = vector.load %arg3[%c0_10, %c0_11] : memref<1x32xf32, #tpu.memory_space<vmem>>, vector<1x32xf32>
    %26 = vector.broadcast %24 : vector<128x1xf32> to vector<128x32xf32>
    %27 = vector.broadcast %25 : vector<1x32xf32> to vector<128x32xf32>
    %28 = arith.mulf %26, %27 : vector<128x32xf32>
    %29 = arith.addf %23, %28 : vector<128x32xf32>
    %c0_12 = arith.constant 0 : index
    %c0_13 = arith.constant 0 : index
    %30 = vector.load %arg4[%c0_12, %c0_13] : memref<1x32xf32, #tpu.memory_space<vmem>>, vector<1x32xf32>
    %31 = vector.broadcast %30 : vector<1x32xf32> to vector<128x32xf32>
    %32 = arith.addf %29, %31 : vector<128x32xf32>
    %cst_14 = arith.constant 0.000000e+00 : f32
    %33 = vector.broadcast %cst_14 : f32 to vector<128x32xf32>
    %34 = arith.maximumf %32, %33 : vector<128x32xf32>
    %c0_15 = arith.constant 0 : index
    %c0_16 = arith.constant 0 : index
    %35 = vector.load %arg5[%c0_15, %c0_16] : memref<32x4xf32, #tpu.memory_space<vmem>>, vector<32x4xf32>
    %cst_17 = arith.constant dense<0.000000e+00> : vector<128x4xf32>
    %36 = tpu.matmul %34, %35, %cst_17 {dimension_numbers = #tpu.dot_dimension_numbers<[1], [0], [0], [1], [0, 0, 1, 1], [], []>} : vector<128x32xf32>, vector<32x4xf32>, vector<128x4xf32> -> vector<128x4xf32>
    %c0_18 = arith.constant 0 : index
    %c0_19 = arith.constant 0 : index
    %37 = vector.load %arg6[%c0_18, %c0_19] : memref<1x4xf32, #tpu.memory_space<vmem>>, vector<1x4xf32>
    %38 = vector.broadcast %37 : vector<1x4xf32> to vector<128x4xf32>
    %39 = arith.addf %36, %38 : vector<128x4xf32>
    %40 = arith.mulf %39, %39 : vector<128x4xf32>
    %cst_20 = arith.constant dense<0.000000e+00> : vector<128xf32>
    %41 = vector.multi_reduction <add>, %40, %cst_20 [1] : vector<128x4xf32> to vector<128xf32>
    %42 = vector.shape_cast %41 : vector<128xf32> to vector<128x1xf32>
    %c128_i32 = arith.constant 128 : i32
    %43 = arith.muli %arg0, %c128_i32 : i32
    %44 = tpu.iota {dimensions = array<i32: 0>} : vector<128x1xi32>
    %45 = vector.broadcast %43 : i32 to vector<128x1xi32>
    %46 = arith.addi %45, %44 : vector<128x1xi32>
    %c200_i32 = arith.constant 200 : i32
    %47 = vector.broadcast %c200_i32 : i32 to vector<128x1xi32>
    %48 = arith.cmpi slt, %46, %47 : vector<128x1xi32>
    %49 = arith.addf %42, %18 : vector<128x1xf32>
    %cst_21 = arith.constant 0.000000e+00 : f32
    %50 = vector.broadcast %cst_21 : f32 to vector<128x1xf32>
    %51 = arith.select %48, %49, %50 : vector<128x1xi1>, vector<128x1xf32>
    %c0_22 = arith.constant 0 : index
    %c0_23 = arith.constant 0 : index
    %52 = vector.load %arg7[%c0_22, %c0_23] : memref<1x1xf32, #tpu.memory_space<vmem>>, vector<1x1xf32>
    %53 = vector.shape_cast %51 : vector<128x1xf32> to vector<1x128x1xf32>
    %cst_24 = arith.constant dense<0.000000e+00> : vector<1xf32>
    %54 = vector.multi_reduction <add>, %53, %cst_24 [1, 2] : vector<1x128x1xf32> to vector<1xf32>
    %55 = vector.shape_cast %54 : vector<1xf32> to vector<1x1x1xf32>
    %56 = vector.extract %55[0, 0, 0] : f32 from vector<1x1x1xf32>
    %57 = vector.broadcast %56 : f32 to vector<1x1xf32>
    %58 = arith.addf %52, %57 : vector<1x1xf32>
    %c0_25 = arith.constant 0 : index
    %c0_26 = arith.constant 0 : index
    %59 = vector.load %arg7[%c0_25, %c0_26] : memref<1x1xf32, #tpu.memory_space<vmem>>, vector<1x1xf32>
    tpu.vector_store %arg7[%c0_25, %c0_26], %58 {strides = array<i32>} : memref<1x1xf32, #tpu.memory_space<vmem>>, vector<1x1xf32>,
    %c1_i32 = arith.constant 1 : i32
    %60 = arith.cmpi eq, %arg0, %c1_i32 : i32
    %61 = arith.extui %60 : i1 to i32
    %c0_i32_27 = arith.constant 0 : i32
    %62 = arith.cmpi ne, %61, %c0_i32_27 : i32
    scf.if %62 {
      %c0_28 = arith.constant 0 : index
      %c0_29 = arith.constant 0 : index
      %63 = vector.load %arg7[%c0_28, %c0_29] : memref<1x1xf32, #tpu.memory_space<vmem>>, vector<1x1xf32>
      %cst_30 = arith.constant 5.000000e-03 : f32
      %64 = vector.broadcast %cst_30 : f32 to vector<1x1xf32>
      %65 = arith.mulf %63, %64 : vector<1x1xf32>
      %c0_31 = arith.constant 0 : index
      %c0_32 = arith.constant 0 : index
      %66 = vector.load %arg7[%c0_31, %c0_32] : memref<1x1xf32, #tpu.memory_space<vmem>>, vector<1x1xf32>
      tpu.vector_store %arg7[%c0_31, %c0_32], %65 {strides = array<i32>} : memref<1x1xf32, #tpu.memory_space<vmem>>, vector<1x1xf32>,
    } else {
    }
    return
  }
  func.func @transform_0(%arg0: i32) -> (i32, i32) {
    %c0_i32 = arith.constant 0 : i32
    %c0_i32_0 = arith.constant 0 : i32
    return %arg0, %c0_i32 : i32, i32
  }
  func.func @transform_1(%arg0: i32) -> (i32, i32) {
    %c0_i32 = arith.constant 0 : i32
    %c0_i32_0 = arith.constant 0 : i32
    %c0_i32_1 = arith.constant 0 : i32
    return %c0_i32, %c0_i32_0 : i32, i32
  }
  func.func @transform_2(%arg0: i32) -> (i32, i32) {
    %c0_i32 = arith.constant 0 : i32
    %c0_i32_0 = arith.constant 0 : i32
    %c0_i32_1 = arith.constant 0 : i32
    return %c0_i32, %c0_i32_0 : i32, i32
  }
  func.func @transform_3(%arg0: i32) -> (i32, i32) {
    %c0_i32 = arith.constant 0 : i32
    %c0_i32_0 = arith.constant 0 : i32
    %c0_i32_1 = arith.constant 0 : i32
    return %c0_i32, %c0_i32_0 : i32, i32
  }
  func.func @transform_4(%arg0: i32) -> (i32, i32) {
    %c0_i32 = arith.constant 0 : i32
    %c0_i32_0 = arith.constant 0 : i32
    %c0_i32_1 = arith.constant 0 : i32
    return %c0_i32, %c0_i32_0 : i32, i32
  }
  func.func @transform_5(%arg0: i32) -> (i32, i32) {
    %c0_i32 = arith.constant 0 : i32
    %c0_i32_0 = arith.constant 0 : i32
    %c0_i32_1 = arith.constant 0 : i32
    return %c0_i32, %c0_i32_0 : i32, i32
  }
  func.func @transform_6(%arg0: i32) -> (i32, i32) {
    %c0_i32 = arith.constant 0 : i32
    %c0_i32_0 = arith.constant 0 : i32
    %c0_i32_1 = arith.constant 0 : i32
    return %c0_i32, %c0_i32_0 : i32, i32
  }
}

</mosaic_0001>

<llo_original>
// kernel: learned_cost_model_loss.1
$region0: #{learned_cost_model_loss.1}
  #allocation0 [shape = 'u32[]', space=smem, size = 0x4, offset = 0x4, fixed_abs, tag = 'smem constant byte address 0x4 - core index']
  #allocation1 [shape = 'u32[144,128]{1,0:T(1,128)}', space=vmem, size = 0x12000, scoped, tag = 'internal scratch']
  %s0 = inlined_call_operand.vmem [shape: f32[256,16], index: 0, kind: input, shape index: {}]
  %s1 = inlined_call_operand.vmem [shape: f32[16,32], index: 1, kind: input, shape index: {}]
  %s2 = inlined_call_operand.vmem [shape: f32[1,32], index: 2, kind: input, shape index: {}]
  %s3 = inlined_call_operand.vmem [shape: f32[1,32], index: 3, kind: input, shape index: {}]
  %s4 = inlined_call_operand.vmem [shape: f32[32,4], index: 4, kind: input, shape index: {}]
  %s5 = inlined_call_operand.vmem [shape: f32[1,4], index: 5, kind: input, shape index: {}]
  %s6 = inlined_call_operand.hbm [shape: f32[1,1], index: 6, kind: output, shape index: {}]
  %s7 = sld [smem:[#allocation0]]
  $region65: #{learned_cost_model_loss.1} parent=0
    _
  %s9 = ssub.s32 1, %s7
  %s10 = scalar_select 0, %s9, %s7
  $region1: #{learned_cost_model_loss.1} parent=0
    #allocation2 [shape = 'u8[512]{0}', space=vmem, size = 0x400, scoped, tag = 'output window, operand 0, single buffered']
    #allocation3 [shape = 's32[2]{0}', space=sflag, size = 0x8, scoped, tag = 'scoped memory for learned_cost_model_loss.1']
    %11 = vsyncpa [#allocation3], 0
    loop: start=0, step=1, limit=4
    $region2: #{learned_cost_model_loss.1} parent=1 // loop_pre_header
      _
    $region3: #{learned_cost_model_loss.1} parent=1 // loop_header
      %s13 = sphi 0, %s17
      %p14 = scmp.ge.s32.totalorder %s13, 4
      %s23 = sphi 0, %s25
      %s26 = sphi 0, %s23
      %s27 = sphi 0, %s26
      %s43 = sphi 0, %s27
      %s47 = sphi 0, %s47
      %s49 = sphi 0, %s47
      %s50 = sphi 0, %s49
      %s64 = sphi 0, %s50
      %s68 = sphi 0, %s68
      %s70 = sphi 0, %s68
      %s71 = sphi 0, %s70
      %s85 = sphi 0, %s71
      %s89 = sphi 0, %s89
      %s91 = sphi 0, %s89
      %s92 = sphi 0, %s91
      %s106 = sphi 0, %s92
      %s110 = sphi 0, %s110
      %s112 = sphi 0, %s110
      %s113 = sphi 0, %s112
      %s127 = sphi 0, %s113
      %s131 = sphi 0, %s131
      %s133 = sphi 0, %s131
      %s134 = sphi 0, %s133
      %s148 = sphi 0, %s134
      %s152 = sphi 0, %s152
      %s154 = sphi 0, %s152
      %s155 = sphi 0, %s154
      %s169 = sphi 0, %s155
    $region4: #{learned_cost_model_loss.1} parent=1 // loop_header_branch
      %16 = sbr.rel (%p14) target = $region8
    $region5: #{learned_cost_model_loss.1} parent=1 // loop_body
      %s18 = ssub.s32 %s13, 1
      %s19 = ssub.s32 %s13, 2
      %s20 = sadd.s32 %s13, 1
      %s21 = ssub.s32 %s13, %s20
      %p22 = scmp.eq.s32.totalorder %s21, 0
      %s24 = sadd.s32 %s23, 1
      %s25 = scalar_select %p22, %s23, %s24
      %p28 = pneg %p22
      %p29 = scmp.eq.s32.totalorder %s13, 1
      %p30 = por %p28, %p29
      %p31 = scmp.ne.s32.totalorder %s23, %s26
      %p32 = scmp.eq.s32.totalorder %s13, 0
      %p33 = por %p31, %p32
      %p34 = scmp.ne.s32.totalorder %s23, %s26
      %p35 = scmp.eq.s32.totalorder %s18, 1
      %p36 = por %p34, %p35
      %p37 = scmp.ne.s32.totalorder %s26, %s27
      %p38 = scmp.eq.s32.totalorder %s18, 0
      %p39 = por %p37, %p38
      %p40 = scmp.ne.s32.totalorder %s26, %s27
      %p41 = scmp.eq.s32.totalorder %s19, 1
      %p42 = por %p40, %p41
      %p44 = scmp.ne.s32.totalorder %s27, %s43
      %p45 = scmp.eq.s32.totalorder %s19, 0
      %p46 = por %p44, %p45
      %s48 = sadd.s32 %s47, 1
      %p51 = scmp.eq.s32.totalorder %s13, 1
      %p52 = scmp.ne.s32.totalorder %s47, %s49
      %p53 = scmp.eq.s32.totalorder %s13, 0
      %p54 = por %p52, %p53
      %p55 = scmp.ne.s32.totalorder %s47, %s49
      %p56 = scmp.eq.s32.totalorder %s18, 1
      %p57 = por %p55, %p56
      %p58 = scmp.ne.s32.totalorder %s49, %s50
      %p59 = scmp.eq.s32.totalorder %s18, 0
      %p60 = por %p58, %p59
      %p61 = scmp.ne.s32.totalorder %s49, %s50
      %p62 = scmp.eq.s32.totalorder %s19, 1
      %p63 = por %p61, %p62
      %p65 = scmp.ne.s32.totalorder %s50, %s64
      %p66 = scmp.eq.s32.totalorder %s19, 0
      %p67 = por %p65, %p66
      %s69 = sadd.s32 %s68, 1
      %p72 = scmp.eq.s32.totalorder %s13, 1
      %p73 = scmp.ne.s32.totalorder %s68, %s70
      %p74 = scmp.eq.s32.totalorder %s13, 0
      %p75 = por %p73, %p74
      %p76 = scmp.ne.s32.totalorder %s68, %s70
      %p77 = scmp.eq.s32.totalorder %s18, 1
      %p78 = por %p76, %p77
      %p79 = scmp.ne.s32.totalorder %s70, %s71
      %p80 = scmp.eq.s32.totalorder %s18, 0
      %p81 = por %p79, %p80
      %p82 = scmp.ne.s32.totalorder %s70, %s71
      %p83 = scmp.eq.s32.totalorder %s19, 1
      %p84 = por %p82, %p83
      %p86 = scmp.ne.s32.totalorder %s71, %s85
      %p87 = scmp.eq.s32.totalorder %s19, 0
      %p88 = por %p86, %p87
      %s90 = sadd.s32 %s89, 1
      %p93 = scmp.eq.s32.totalorder %s13, 1
      %p94 = scmp.ne.s32.totalorder %s89, %s91
      %p95 = scmp.eq.s32.totalorder %s13, 0
      %p96 = por %p94, %p95
      %p97 = scmp.ne.s32.totalorder %s89, %s91
      %p98 = scmp.eq.s32.totalorder %s18, 1
      %p99 = por %p97, %p98
      %p100 = scmp.ne.s32.totalorder %s91, %s92
      %p101 = scmp.eq.s32.totalorder %s18, 0
      %p102 = por %p100, %p101
      %p103 = scmp.ne.s32.totalorder %s91, %s92
      %p104 = scmp.eq.s32.totalorder %s19, 1
      %p105 = por %p103, %p104
      %p107 = scmp.ne.s32.totalorder %s92, %s106
      %p108 = scmp.eq.s32.totalorder %s19, 0
      %p109 = por %p107, %p108
      %s111 = sadd.s32 %s110, 1
      %p114 = scmp.eq.s32.totalorder %s13, 1
      %p115 = scmp.ne.s32.totalorder %s110, %s112
      %p116 = scmp.eq.s32.totalorder %s13, 0
      %p117 = por %p115, %p116
      %p118 = scmp.ne.s32.totalorder %s110, %s112
      %p119 = scmp.eq.s32.totalorder %s18, 1
      %p120 = por %p118, %p119
      %p121 = scmp.ne.s32.totalorder %s112, %s113
      %p122 = scmp.eq.s32.totalorder %s18, 0
      %p123 = por %p121, %p122
      %p124 = scmp.ne.s32.totalorder %s112, %s113
      %p125 = scmp.eq.s32.totalorder %s19, 1
      %p126 = por %p124, %p125
      %p128 = scmp.ne.s32.totalorder %s113, %s127
      %p129 = scmp.eq.s32.totalorder %s19, 0
      %p130 = por %p128, %p129
      %s132 = sadd.s32 %s131, 1
      %p135 = scmp.eq.s32.totalorder %s13, 1
      %p136 = scmp.ne.s32.totalorder %s131, %s133
      %p137 = scmp.eq.s32.totalorder %s13, 0
      %p138 = por %p136, %p137
      %p139 = scmp.ne.s32.totalorder %s131, %s133
      %p140 = scmp.eq.s32.totalorder %s18, 1
      %p141 = por %p139, %p140
      %p142 = scmp.ne.s32.totalorder %s133, %s134
      %p143 = scmp.eq.s32.totalorder %s18, 0
      %p144 = por %p142, %p143
      %p145 = scmp.ne.s32.totalorder %s133, %s134
      %p146 = scmp.eq.s32.totalorder %s19, 1
      %p147 = por %p145, %p146
      %p149 = scmp.ne.s32.totalorder %s134, %s148
      %p150 = scmp.eq.s32.totalorder %s19, 0
      %p151 = por %p149, %p150
      %s153 = sadd.s32 %s152, 1
      %p156 = scmp.eq.s32.totalorder %s13, 1
      %p157 = scmp.ne.s32.totalorder %s152, %s154
      %p158 = scmp.eq.s32.totalorder %s13, 0
      %p159 = por %p157, %p158
      %p160 = scmp.ne.s32.totalorder %s152, %s154
      %p161 = scmp.eq.s32.totalorder %s18, 1
      %p162 = por %p160, %p161
      %p163 = scmp.ne.s32.totalorder %s154, %s155
      %p164 = scmp.eq.s32.totalorder %s18, 0
      %p165 = por %p163, %p164
      %p166 = scmp.ne.s32.totalorder %s154, %s155
      %p167 = scmp.eq.s32.totalorder %s19, 1
      %p168 = por %p166, %p167
      %p170 = scmp.ne.s32.totalorder %s155, %s169
      %p171 = scmp.eq.s32.totalorder %s19, 0
      %p172 = por %p170, %p171
      %p173 = scmp.le.s32.totalorder 1, %s13
      %p174 = scmp.lt.s32.totalorder %s13, 3
      %p175 = pnand %p173, %p174
      %p176 = pneg %p175
      // Predicated region
      $region9: #{learned_cost_model_loss.1} parent=5 // pred_check
        _
      $region10: #{learned_cost_model_loss.1} parent=5 // pred_check_branch
        %178 = sbr.rel (%p175) target = $region12
      $region11: #{learned_cost_model_loss.1} parent=5 // pred_region
        %s179 = ssub.s32 %s13, 1
        // Predicated region
        $region13: #{learned_cost_model_loss.1} parent=11 // pred_check
          %p180 = pneg %p60
        $region14: #{learned_cost_model_loss.1} parent=11 // pred_check_branch
          %182 = sbr.rel (%p180) target = $region16
        $region15: #{learned_cost_model_loss.1} parent=11 // pred_region
          _
        $region16: #{learned_cost_model_loss.1} parent=11 // pred_fallthru
          _
        // Predicated region
        $region17: #{learned_cost_model_loss.1} parent=11 // pred_check
          %p183 = pneg %p81
        $region18: #{learned_cost_model_loss.1} parent=11 // pred_check_branch
          %185 = sbr.rel (%p183) target = $region20
        $region19: #{learned_cost_model_loss.1} parent=11 // pred_region
          _
        $region20: #{learned_cost_model_loss.1} parent=11 // pred_fallthru
          _
        // Predicated region
        $region21: #{learned_cost_model_loss.1} parent=11 // pred_check
          %p186 = pneg %p102
        $region22: #{learned_cost_model_loss.1} parent=11 // pred_check_branch
          %188 = sbr.rel (%p186) target = $region24
        $region23: #{learned_cost_model_loss.1} parent=11 // pred_region
          _
        $region24: #{learned_cost_model_loss.1} parent=11 // pred_fallthru
          _
        // Predicated region
        $region25: #{learned_cost_model_loss.1} parent=11 // pred_check
          %p189 = pneg %p123
        $region26: #{learned_cost_model_loss.1} parent=11 // pred_check_branch
          %191 = sbr.rel (%p189) target = $region28
        $region27: #{learned_cost_model_loss.1} parent=11 // pred_region
          _
        $region28: #{learned_cost_model_loss.1} parent=11 // pred_fallthru
          _
        // Predicated region
        $region29: #{learned_cost_model_loss.1} parent=11 // pred_check
          %p192 = pneg %p144
        $region30: #{learned_cost_model_loss.1} parent=11 // pred_check_branch
          %194 = sbr.rel (%p192) target = $region32
        $region31: #{learned_cost_model_loss.1} parent=11 // pred_region
          _
        $region32: #{learned_cost_model_loss.1} parent=11 // pred_fallthru
          _
      $region12: #{learned_cost_model_loss.1} parent=5 // pred_fallthru
        _
      %p195 = scmp.lt.s32.totalorder %s13, 2
      // Predicated region
      $region33: #{learned_cost_model_loss.1} parent=5 // pred_check
        %p196 = pneg %p195
      $region34: #{learned_cost_model_loss.1} parent=5 // pred_check_branch
        %198 = sbr.rel (%p196) target = $region36
      $region35: #{learned_cost_model_loss.1} parent=5 // pred_region
        // Predicated region
        $region37: #{learned_cost_model_loss.1} parent=35 // pred_check
          %p199 = pneg %p33
        $region38: #{learned_cost_model_loss.1} parent=35 // pred_check_branch
          %201 = sbr.rel (%p199) target = $region40
        $region39: #{learned_cost_model_loss.1} parent=35 // pred_region
          %s202 = smul.u32 16, %s13
          %p203 = scmp.lt.s32.totalorder %s202, 31
          %s204 = scalar_select %p203, %s202, 31
          %s205 = smul.addr %s204, 8
          %s206 = scalar_lea.vmem %s0, %s205
          %s207 = smul.u32 16, %s13
        $region40: #{learned_cost_model_loss.1} parent=35 // pred_fallthru
          _
      $region36: #{learned_cost_model_loss.1} parent=5 // pred_fallthru
        _
      %p208 = scmp.le.s32.totalorder 1, %s13
      %p209 = scmp.lt.s32.totalorder %s13, 3
      %p210 = pnand %p208, %p209
      %p211 = pneg %p210
      // Predicated region
      $region41: #{learned_cost_model_loss.1} parent=5 // pred_check
        _
      $region42: #{learned_cost_model_loss.1} parent=5 // pred_check_branch
        %213 = sbr.rel (%p210) target = $region44
      $region43: #{learned_cost_model_loss.1} parent=5 // pred_region
        %s214 = ssub.s32 %s13, 1
        %s215 = smul.u32 16, %s18
        %p216 = scmp.lt.s32.totalorder %s215, 31
        %s217 = scalar_select %p216, %s215, 31
        %s218 = smul.addr %s217, 8
        %s219 = scalar_lea.vmem %s0, %s218
        %p220 = pneg %p39
        %p221 = pneg %p36
        %p222 = pneg %p60
        %p223 = pneg %p57
        %p224 = pneg %p81
        %p225 = pneg %p78
        %p226 = pneg %p102
        %p227 = pneg %p99
        %p228 = pneg %p123
        %p229 = pneg %p120
        %p230 = pneg %p144
        %p231 = pneg %p141
        %p232 = pneg %p165
        %p233 = pneg %p162
        %s234 = smul.u32 16, %s18
        %p235 = scmp.lt.s32.totalorder %s234, 31
        %s236 = scalar_select %p235, %s234, 31
        %s237 = smul.addr %s236, 8
        %s238 = scalar_lea.vmem %s0, %s237
        %s239 = smul.u32 16, %s18
        %p240 = scmp.eq.s32.totalorder %s18, 0
        // Predicated region
        $region45: #{learned_cost_model_loss.1} parent=43 // pred_check
          %p241 = pneg %p240
        $region46: #{learned_cost_model_loss.1} parent=43 // pred_check_branch
          %243 = sbr.rel (%p241) target = $region48
        $region47: #{learned_cost_model_loss.1} parent=43 // pred_region
          %vm244 = vcmask 0
          %245 = vst.msk [vmem:[#allocation2] sm:$0x1] %vm244, 0.0
        $region48: #{learned_cost_model_loss.1} parent=43 // pred_fallthru
          _
        %v246 = vld [vmem:[%s238] sm:$0xff]
        %v247 = vld [vmem:[%s238 + $0x8] sm:$0xff]
        %v248 = vld [vmem:[%s238 + $0x10] sm:$0xff]
        %v249 = vld [vmem:[%s238 + $0x18] sm:$0xff]
        %v250 = vld [vmem:[%s238 + $0x20] sm:$0xff]
        %v251 = vld [vmem:[%s238 + $0x28] sm:$0xff]
        %v252 = vld [vmem:[%s238 + $0x30] sm:$0xff]
        %v253 = vld [vmem:[%s238 + $0x38] sm:$0xff]
        %v254 = vld [vmem:[%s238 + $0x40] sm:$0xff]
        %v255 = vld [vmem:[%s238 + $0x48] sm:$0xff]
        %v256 = vld [vmem:[%s238 + $0x50] sm:$0xff]
        %v257 = vld [vmem:[%s238 + $0x58] sm:$0xff]
        %v258 = vld [vmem:[%s238 + $0x60] sm:$0xff]
        %v259 = vld [vmem:[%s238 + $0x68] sm:$0xff]
        %v260 = vld [vmem:[%s238 + $0x70] sm:$0xff]
        %v261 = vld [vmem:[%s238 + $0x78] sm:$0xff]
        %278 = vrot.lane.b32.xlu0 %v246, 4
        %v279 = vpop.permute.xlu0 %278
        %280 = vrot.lane.b32.xlu0 %v247, 4
        %v281 = vpop.permute.xlu0 %280
        %282 = vrot.lane.b32.xlu0 %v248, 4
        %v283 = vpop.permute.xlu0 %282
        %284 = vrot.lane.b32.xlu0 %v249, 4
        %v285 = vpop.permute.xlu0 %284
        %286 = vrot.lane.b32.xlu0 %v250, 4
        %v287 = vpop.permute.xlu0 %286
        %288 = vrot.lane.b32.xlu0 %v251, 4
        %v289 = vpop.permute.xlu0 %288
        %290 = vrot.lane.b32.xlu0 %v252, 4
        %v291 = vpop.permute.xlu0 %290
        %292 = vrot.lane.b32.xlu0 %v253, 4
        %v293 = vpop.permute.xlu0 %292
        %294 = vrot.lane.b32.xlu0 %v254, 4
        %v295 = vpop.permute.xlu0 %294
        %296 = vrot.lane.b32.xlu0 %v255, 4
        %v297 = vpop.permute.xlu0 %296
        %298 = vrot.lane.b32.xlu0 %v256, 4
        %v299 = vpop.permute.xlu0 %298
        %300 = vrot.lane.b32.xlu0 %v257, 4
        %v301 = vpop.permute.xlu0 %300
        %302 = vrot.lane.b32.xlu0 %v258, 4
        %v303 = vpop.permute.xlu0 %302
        %304 = vrot.lane.b32.xlu0 %v259, 4
        %v305 = vpop.permute.xlu0 %304
        %306 = vrot.lane.b32.xlu0 %v260, 4
        %v307 = vpop.permute.xlu0 %306
        %308 = vrot.lane.b32.xlu0 %v261, 4
        %v309 = vpop.permute.xlu0 %308
        %vm326 = vcmp.ge.f32.partialorder %v246, %v279
        %vm327 = vcmp.ge.f32.partialorder %v247, %v281
        %vm328 = vcmp.ge.f32.partialorder %v248, %v283
        %vm329 = vcmp.ge.f32.partialorder %v249, %v285
        %vm330 = vcmp.ge.f32.partialorder %v250, %v287
        %vm331 = vcmp.ge.f32.partialorder %v251, %v289
        %vm332 = vcmp.ge.f32.partialorder %v252, %v291
        %vm333 = vcmp.ge.f32.partialorder %v253, %v293
        %vm334 = vcmp.ge.f32.partialorder %v254, %v295
        %vm335 = vcmp.ge.f32.partialorder %v255, %v297
        %vm336 = vcmp.ge.f32.partialorder %v256, %v299
        %vm337 = vcmp.ge.f32.partialorder %v257, %v301
        %vm338 = vcmp.ge.f32.partialorder %v258, %v303
        %vm339 = vcmp.ge.f32.partialorder %v259, %v305
        %vm340 = vcmp.ge.f32.partialorder %v260, %v307
        %vm341 = vcmp.ge.f32.partialorder %v261, %v309
        %v342 = vsub.f32 %v246, %v279
        %v343 = vsub.f32 %v247, %v281
        %v344 = vsub.f32 %v248, %v283
        %v345 = vsub.f32 %v249, %v285
        %v346 = vsub.f32 %v250, %v287
        %v347 = vsub.f32 %v251, %v289
        %v348 = vsub.f32 %v252, %v291
        %v349 = vsub.f32 %v253, %v293
        %v350 = vsub.f32 %v254, %v295
        %v351 = vsub.f32 %v255, %v297
        %v352 = vsub.f32 %v256, %v299
        %v353 = vsub.f32 %v257, %v301
        %v354 = vsub.f32 %v258, %v303
        %v355 = vsub.f32 %v259, %v305
        %v356 = vsub.f32 %v260, %v307
        %v357 = vsub.f32 %v261, %v309
        %v358 = vmul.f32 %v342, 10.0
        %v359 = vmul.f32 %v343, 10.0
        %v360 = vmul.f32 %v344, 10.0
        %v361 = vmul.f32 %v345, 10.0
        %v362 = vmul.f32 %v346, 10.0
        %v363 = vmul.f32 %v347, 10.0
        %v364 = vmul.f32 %v348, 10.0
        %v365 = vmul.f32 %v349, 10.0
        %v366 = vmul.f32 %v350, 10.0
        %v367 = vmul.f32 %v351, 10.0
        %v368 = vmul.f32 %v352, 10.0
        %v369 = vmul.f32 %v353, 10.0
        %v370 = vmul.f32 %v354, 10.0
        %v371 = vmul.f32 %v355, 10.0
        %v372 = vmul.f32 %v356, 10.0
        %v373 = vmul.f32 %v357, 10.0
        %v374 = vsel %vm326, %v358, 0.0
        %v375 = vsel %vm327, %v359, 0.0
        %v376 = vsel %vm328, %v360, 0.0
        %v377 = vsel %vm329, %v361, 0.0
        %v378 = vsel %vm330, %v362, 0.0
        %v379 = vsel %vm331, %v363, 0.0
        %v380 = vsel %vm332, %v364, 0.0
        %v381 = vsel %vm333, %v365, 0.0
        %v382 = vsel %vm334, %v366, 0.0
        %v383 = vsel %vm335, %v367, 0.0
        %v384 = vsel %vm336, %v368, 0.0
        %v385 = vsel %vm337, %v369, 0.0
        %v386 = vsel %vm338, %v370, 0.0
        %v387 = vsel %vm339, %v371, 0.0
        %v388 = vsel %vm340, %v372, 0.0
        %v389 = vsel %vm341, %v373, 0.0
        %vm390 = vcmp.lt.f32.partialorder %v246, 0.0
        %vm391 = vcmp.lt.f32.partialorder %v247, 0.0
        %vm392 = vcmp.lt.f32.partialorder %v248, 0.0
        %vm393 = vcmp.lt.f32.partialorder %v249, 0.0
        %vm394 = vcmp.lt.f32.partialorder %v250, 0.0
        %vm395 = vcmp.lt.f32.partialorder %v251, 0.0
        %vm396 = vcmp.lt.f32.partialorder %v252, 0.0
        %vm397 = vcmp.lt.f32.partialorder %v253, 0.0
        %vm398 = vcmp.lt.f32.partialorder %v254, 0.0
        %vm399 = vcmp.lt.f32.partialorder %v255, 0.0
        %vm400 = vcmp.lt.f32.partialorder %v256, 0.0
        %vm401 = vcmp.lt.f32.partialorder %v257, 0.0
        %vm402 = vcmp.lt.f32.partialorder %v258, 0.0
        %vm403 = vcmp.lt.f32.partialorder %v259, 0.0
        %vm404 = vcmp.lt.f32.partialorder %v260, 0.0
        %vm405 = vcmp.lt.f32.partialorder %v261, 0.0
        %v406 = vsub.f32 0.0, %v246
        %v407 = vsub.f32 0.0, %v247
        %v408 = vsub.f32 0.0, %v248
        %v409 = vsub.f32 0.0, %v249
        %v410 = vsub.f32 0.0, %v250
        %v411 = vsub.f32 0.0, %v251
        %v412 = vsub.f32 0.0, %v252
        %v413 = vsub.f32 0.0, %v253
        %v414 = vsub.f32 0.0, %v254
        %v415 = vsub.f32 0.0, %v255
        %v416 = vsub.f32 0.0, %v256
        %v417 = vsub.f32 0.0, %v257
        %v418 = vsub.f32 0.0, %v258
        %v419 = vsub.f32 0.0, %v259
        %v420 = vsub.f32 0.0, %v260
        %v421 = vsub.f32 0.0, %v261
        %v422 = vmul.f32 %v406, 10.0
        %v423 = vmul.f32 %v407, 10.0
        %v424 = vmul.f32 %v408, 10.0
        %v425 = vmul.f32 %v409, 10.0
        %v426 = vmul.f32 %v410, 10.0
        %v427 = vmul.f32 %v411, 10.0
        %v428 = vmul.f32 %v412, 10.0
        %v429 = vmul.f32 %v413, 10.0
        %v430 = vmul.f32 %v414, 10.0
        %v431 = vmul.f32 %v415, 10.0
        %v432 = vmul.f32 %v416, 10.0
        %v433 = vmul.f32 %v417, 10.0
        %v434 = vmul.f32 %v418, 10.0
        %v435 = vmul.f32 %v419, 10.0
        %v436 = vmul.f32 %v420, 10.0
        %v437 = vmul.f32 %v421, 10.0
        %v438 = vsel %vm390, %v422, %v374
        %v439 = vsel %vm391, %v423, %v375
        %v440 = vsel %vm392, %v424, %v376
        %v441 = vsel %vm393, %v425, %v377
        %v442 = vsel %vm394, %v426, %v378
        %v443 = vsel %vm395, %v427, %v379
        %v444 = vsel %vm396, %v428, %v380
        %v445 = vsel %vm397, %v429, %v381
        %v446 = vsel %vm398, %v430, %v382
        %v447 = vsel %vm399, %v431, %v383
        %v448 = vsel %vm400, %v432, %v384
        %v449 = vsel %vm401, %v433, %v385
        %v450 = vsel %vm402, %v434, %v386
        %v451 = vsel %vm403, %v435, %v387
        %v452 = vsel %vm404, %v436, %v388
        %v453 = vsel %vm405, %v437, %v389
        %v454 = vmin.f32 %v246, %v279
        %v455 = vmin.f32 %v247, %v281
        %v456 = vmin.f32 %v248, %v283
        %v457 = vmin.f32 %v249, %v285
        %v458 = vmin.f32 %v250, %v287
        %v459 = vmin.f32 %v251, %v289
        %v460 = vmin.f32 %v252, %v291
        %v461 = vmin.f32 %v253, %v293
        %v462 = vmin.f32 %v254, %v295
        %v463 = vmin.f32 %v255, %v297
        %v464 = vmin.f32 %v256, %v299
        %v465 = vmin.f32 %v257, %v301
        %v466 = vmin.f32 %v258, %v303
        %v467 = vmin.f32 %v259, %v305
        %v468 = vmin.f32 %v260, %v307
        %v469 = vmin.f32 %v261, %v309
        %v470 = vmax.f32 %v454, 0.0
        %v471 = vmax.f32 %v455, 0.0
        %v472 = vmax.f32 %v456, 0.0
        %v473 = vmax.f32 %v457, 0.0
        %v474 = vmax.f32 %v458, 0.0
        %v475 = vmax.f32 %v459, 0.0
        %v476 = vmax.f32 %v460, 0.0
        %v477 = vmax.f32 %v461, 0.0
        %v478 = vmax.f32 %v462, 0.0
        %v479 = vmax.f32 %v463, 0.0
        %v480 = vmax.f32 %v464, 0.0
        %v481 = vmax.f32 %v465, 0.0
        %v482 = vmax.f32 %v466, 0.0
        %v483 = vmax.f32 %v467, 0.0
        %v484 = vmax.f32 %v468, 0.0
        %v485 = vmax.f32 %v469, 0.0
        %v486 = vld [vmem:[%s1] sm:$0xff]
        %v487 = vld [vmem:[%s1 + $0x8] sm:$0xff]
        %v488 = vsub.f32 %v470, %v246
        %v489 = vsub.f32 %v471, %v247
        %v490 = vsub.f32 %v472, %v248
        %v491 = vsub.f32 %v473, %v249
        %v492 = vsub.f32 %v474, %v250
        %v493 = vsub.f32 %v475, %v251
        %v494 = vsub.f32 %v476, %v252
        %v495 = vsub.f32 %v477, %v253
        %v496 = vsub.f32 %v478, %v254
        %v497 = vsub.f32 %v479, %v255
        %v498 = vsub.f32 %v480, %v256
        %v499 = vsub.f32 %v481, %v257
        %v500 = vsub.f32 %v482, %v258
        %v501 = vsub.f32 %v483, %v259
        %v502 = vsub.f32 %v484, %v260
        %v503 = vsub.f32 %v485, %v261
        %v504 = vld [vmem:[%s2] sm:$0x1]
        %506 = vset.pattern.permute.xlu0 8
        %507 = vperm.xlu0 %506, %v488
        %v508 = vpop.permute.xlu0 %507
        %511 = vset.pattern.permute.xlu0 8
        %512 = vperm.xlu0 %511, %v489
        %v513 = vpop.permute.xlu0 %512
        %516 = vset.pattern.permute.xlu0 8
        %517 = vperm.xlu0 %516, %v490
        %v518 = vpop.permute.xlu0 %517
        %521 = vset.pattern.permute.xlu0 8
        %522 = vperm.xlu0 %521, %v491
        %v523 = vpop.permute.xlu0 %522
        %526 = vset.pattern.permute.xlu0 8
        %527 = vperm.xlu0 %526, %v492
        %v528 = vpop.permute.xlu0 %527
        %531 = vset.pattern.permute.xlu0 8
        %532 = vperm.xlu0 %531, %v493
        %v533 = vpop.permute.xlu0 %532
        %536 = vset.pattern.permute.xlu0 8
        %537 = vperm.xlu0 %536, %v494
        %v538 = vpop.permute.xlu0 %537
        %541 = vset.pattern.permute.xlu0 8
        %542 = vperm.xlu0 %541, %v495
        %v543 = vpop.permute.xlu0 %542
        %546 = vset.pattern.permute.xlu0 8
        %547 = vperm.xlu0 %546, %v496
        %v548 = vpop.permute.xlu0 %547
        %551 = vset.pattern.permute.xlu0 8
        %552 = vperm.xlu0 %551, %v497
        %v553 = vpop.permute.xlu0 %552
        %556 = vset.pattern.permute.xlu0 8
        %557 = vperm.xlu0 %556, %v498
        %v558 = vpop.permute.xlu0 %557
        %561 = vset.pattern.permute.xlu0 8
        %562 = vperm.xlu0 %561, %v499
        %v563 = vpop.permute.xlu0 %562
        %566 = vset.pattern.permute.xlu0 8
        %567 = vperm.xlu0 %566, %v500
        %v568 = vpop.permute.xlu0 %567
        %571 = vset.pattern.permute.xlu0 8
        %572 = vperm.xlu0 %571, %v501
        %v573 = vpop.permute.xlu0 %572
        %576 = vset.pattern.permute.xlu0 8
        %577 = vperm.xlu0 %576, %v502
        %v578 = vpop.permute.xlu0 %577
        %581 = vset.pattern.permute.xlu0 8
        %582 = vperm.xlu0 %581, %v503
        %v583 = vpop.permute.xlu0 %582
        %v586 = vlaneseq
        %v587 = vshrl.u32 %v586, 7
        %v588 = vsub.s32 0, %v587
        %v589 = vrot.slane %v504, %v588
        %v591 = vmul.f32 %v508, %v589
        %v592 = vmul.f32 %v513, %v589
        %v593 = vmul.f32 %v518, %v589
        %v594 = vmul.f32 %v523, %v589
        %v595 = vmul.f32 %v528, %v589
        %v596 = vmul.f32 %v533, %v589
        %v597 = vmul.f32 %v538, %v589
        %v598 = vmul.f32 %v543, %v589
        %v599 = vmul.f32 %v548, %v589
        %v600 = vmul.f32 %v553, %v589
        %v601 = vmul.f32 %v558, %v589
        %v602 = vmul.f32 %v563, %v589
        %v603 = vmul.f32 %v568, %v589
        %v604 = vmul.f32 %v573, %v589
        %v605 = vmul.f32 %v578, %v589
        %v606 = vmul.f32 %v583, %v589
        %vm607 = vcmask 130048
        %v608 = vsel %vm607, %v246, 0
        %v610 = vsel %vm607, %v247, 0
        %v612 = vsel %vm607, %v248, 0
        %v614 = vsel %vm607, %v249, 0
        %v616 = vsel %vm607, %v250, 0
        %v618 = vsel %vm607, %v251, 0
        %v620 = vsel %vm607, %v252, 0
        %v622 = vsel %vm607, %v253, 0
        %v624 = vsel %vm607, %v254, 0
        %v626 = vsel %vm607, %v255, 0
        %v628 = vsel %vm607, %v256, 0
        %v630 = vsel %vm607, %v257, 0
        %v632 = vsel %vm607, %v258, 0
        %v634 = vsel %vm607, %v259, 0
        %v636 = vsel %vm607, %v260, 0
        %v638 = vsel %vm607, %v261, 0
        %640 = vmatprep.subr.mxu0 0.0
        %641 = vmatpush1.msra.mxu0 0.0
        %642 = vmatprep.subr.mxu0 0.0
        %643 = vmatpush1.msra.mxu0 0.0
        %644 = vmatprep.subr.mxu0 0.0
        %645 = vmatpush1.msra.mxu0 0.0
        %646 = vmatprep.subr.mxu0 0.0
        %647 = vmatpush1.msra.mxu0 0.0
        %648 = vmatprep.subr.mxu0 0.0
        %649 = vmatpush1.msra.mxu0 0.0
        %650 = vmatprep.subr.mxu0 0.0
        %651 = vmatpush1.msra.mxu0 0.0
        %652 = vmatprep.subr.mxu0 0.0
        %653 = vmatpush1.msra.mxu0 0.0
        %654 = vmatprep.subr.mxu0 0.0
        %655 = vmatpush1.msra.mxu0 0.0
        %656 = vmatprep.subr.mxu0 0.0
        %657 = vmatpush1.msra.mxu0 0.0
        %658 = vmatprep.subr.mxu0 0.0
        %659 = vmatpush1.msra.mxu0 0.0
        %660 = vmatprep.subr.mxu0 0.0
        %661 = vmatpush1.msra.mxu0 0.0
        %662 = vmatprep.subr.mxu0 0.0
        %663 = vmatpush1.msra.mxu0 0.0
        %664 = vmatprep.subr.mxu0 0.0
        %665 = vmatpush1.msra.mxu0 0.0
        %666 = vmatprep.subr.mxu0 0.0
        %667 = vmatpush1.msra.mxu0 0.0
        %668 = vmatprep.subr.mxu0 0.0
        %669 = vmatpush1.msra.mxu0 %v487
        %670 = vmatprep.subr.mxu0 0.0
        %671 = vmatpush1.msra.mxu0 %v486
        %672 = vmatprep.subr.mxu0 0.0
        %673 = vmatpush2.msra.mxu0 0.0
        %674 = vmatprep.subr.mxu0 0.0
        %675 = vmatpush2.msra.mxu0 0.0
        %676 = vmatprep.subr.mxu0 0.0
        %677 = vmatpush2.msra.mxu0 0.0
        %678 = vmatprep.subr.mxu0 0.0
        %679 = vmatpush2.msra.mxu0 0.0
        %680 = vmatprep.subr.mxu0 0.0
        %681 = vmatpush2.msra.mxu0 0.0
        %682 = vmatprep.subr.mxu0 0.0
        %683 = vmatpush2.msra.mxu0 0.0
        %684 = vmatprep.subr.mxu0 0.0
        %685 = vmatpush2.msra.mxu0 0.0
        %686 = vmatprep.subr.mxu0 0.0
        %687 = vmatpush2.msra.mxu0 0.0
        %688 = vmatprep.subr.mxu0 0.0
        %689 = vmatpush2.msra.mxu0 0.0
        %690 = vmatprep.subr.mxu0 0.0
        %691 = vmatpush2.msra.mxu0 0.0
        %692 = vmatprep.subr.mxu0 0.0
        %693 = vmatpush2.msra.mxu0 0.0
        %694 = vmatprep.subr.mxu0 0.0
        %695 = vmatpush2.msra.mxu0 0.0
        %696 = vmatprep.subr.mxu0 0.0
        %697 = vmatpush2.msra.mxu0 0.0
        %698 = vmatprep.subr.mxu0 0.0
        %699 = vmatpush2.msra.mxu0 0.0
        %700 = vmatprep.subr.mxu0 0.0
        %701 = vmatpush2.msra.mxu0 0.0
        %702 = vmatprep.subr.mxu0 0.0
        %703 = vmatpush2.msra.mxu0 0.0
        %704 = vmatprep.mubr.f32.mxu0 0.0
        %705 = vmatmul.mubr.f32.gmra.mxu0 %v608
        %v706 = vpop.f32.mrf.mxu0
        %v707 = vadd.f32 %v591, %v706
        %v708 = vpop.f32.mrf.mxu0
        %709 = vmatprep.mubr.f32.mxu0 0.0
        %710 = vmatmul.mubr.f32.gmra.mxu0 %v610
        %v711 = vpop.f32.mrf.mxu0
        %v712 = vadd.f32 %v592, %v711
        %v713 = vpop.f32.mrf.mxu0
        %714 = vmatprep.mubr.f32.mxu0 0.0
        %715 = vmatmul.mubr.f32.gmra.mxu0 %v612
        %v716 = vpop.f32.mrf.mxu0
        %v717 = vadd.f32 %v593, %v716
        %v718 = vpop.f32.mrf.mxu0
        %719 = vmatprep.mubr.f32.mxu0 0.0
        %720 = vmatmul.mubr.f32.gmra.mxu0 %v614
        %v721 = vpop.f32.mrf.mxu0
        %v722 = vadd.f32 %v594, %v721
        %v723 = vpop.f32.mrf.mxu0
        %724 = vmatprep.mubr.f32.mxu0 0.0
        %725 = vmatmul.mubr.f32.gmra.mxu0 %v616
        %v726 = vpop.f32.mrf.mxu0
        %v727 = vadd.f32 %v595, %v726
        %v728 = vpop.f32.mrf.mxu0
        %729 = vmatprep.mubr.f32.mxu0 0.0
        %730 = vmatmul.mubr.f32.gmra.mxu0 %v618
        %v731 = vpop.f32.mrf.mxu0
        %v732 = vadd.f32 %v596, %v731
        %v733 = vpop.f32.mrf.mxu0
        %734 = vmatprep.mubr.f32.mxu0 0.0
        %735 = vmatmul.mubr.f32.gmra.mxu0 %v620
        %v736 = vpop.f32.mrf.mxu0
        %v737 = vadd.f32 %v597, %v736
        %v738 = vpop.f32.mrf.mxu0
        %739 = vmatprep.mubr.f32.mxu0 0.0
        %740 = vmatmul.mubr.f32.gmra.mxu0 %v622
        %v741 = vpop.f32.mrf.mxu0
        %v742 = vadd.f32 %v598, %v741
        %v743 = vpop.f32.mrf.mxu0
        %744 = vmatprep.mubr.f32.mxu0 0.0
        %745 = vmatmul.mubr.f32.gmra.mxu0 %v624
        %v746 = vpop.f32.mrf.mxu0
        %v747 = vadd.f32 %v599, %v746
        %v748 = vpop.f32.mrf.mxu0
        %749 = vmatprep.mubr.f32.mxu0 0.0
        %750 = vmatmul.mubr.f32.gmra.mxu0 %v626
        %v751 = vpop.f32.mrf.mxu0
        %v752 = vadd.f32 %v600, %v751
        %v753 = vpop.f32.mrf.mxu0
        %754 = vmatprep.mubr.f32.mxu0 0.0
        %755 = vmatmul.mubr.f32.gmra.mxu0 %v628
        %v756 = vpop.f32.mrf.mxu0
        %v757 = vadd.f32 %v601, %v756
        %v758 = vpop.f32.mrf.mxu0
        %759 = vmatprep.mubr.f32.mxu0 0.0
        %760 = vmatmul.mubr.f32.gmra.mxu0 %v630
        %v761 = vpop.f32.mrf.mxu0
        %v762 = vadd.f32 %v602, %v761
        %v763 = vpop.f32.mrf.mxu0
        %764 = vmatprep.mubr.f32.mxu0 0.0
        %765 = vmatmul.mubr.f32.gmra.mxu0 %v632
        %v766 = vpop.f32.mrf.mxu0
        %v767 = vadd.f32 %v603, %v766
        %v768 = vpop.f32.mrf.mxu0
        %769 = vmatprep.mubr.f32.mxu0 0.0
        %770 = vmatmul.mubr.f32.gmra.mxu0 %v634
        %v771 = vpop.f32.mrf.mxu0
        %v772 = vadd.f32 %v604, %v771
        %v773 = vpop.f32.mrf.mxu0
        %774 = vmatprep.mubr.f32.mxu0 0.0
        %775 = vmatmul.mubr.f32.gmra.mxu0 %v636
        %v776 = vpop.f32.mrf.mxu0
        %v777 = vadd.f32 %v605, %v776
        %v778 = vpop.f32.mrf.mxu0
        %779 = vmatprep.mubr.f32.mxu0 0.0
        %780 = vmatmul.mubr.f32.gmra.mxu0 %v638
        %v781 = vpop.f32.mrf.mxu0
        %v782 = vadd.f32 %v606, %v781
        %v783 = vpop.f32.mrf.mxu0
        %784 = vdwg.mxu0
        %v785 = vld [vmem:[%s3] sm:$0x1]
        %v787 = vlaneseq
        %v788 = vshrl.u32 %v787, 7
        %v789 = vsub.s32 0, %v788
        %v790 = vrot.slane %v785, %v789
        %v792 = vadd.f32 %v707, %v790
        %v793 = vadd.f32 %v712, %v790
        %v794 = vadd.f32 %v717, %v790
        %v795 = vadd.f32 %v722, %v790
        %v796 = vadd.f32 %v727, %v790
        %v797 = vadd.f32 %v732, %v790
        %v798 = vadd.f32 %v737, %v790
        %v799 = vadd.f32 %v742, %v790
        %v800 = vadd.f32 %v747, %v790
        %v801 = vadd.f32 %v752, %v790
        %v802 = vadd.f32 %v757, %v790
        %v803 = vadd.f32 %v762, %v790
        %v804 = vadd.f32 %v767, %v790
        %v805 = vadd.f32 %v772, %v790
        %v806 = vadd.f32 %v777, %v790
        %v807 = vadd.f32 %v782, %v790
        %v808 = vmax.f32 %v792, 0.0
        %v809 = vmax.f32 %v793, 0.0
        %v810 = vmax.f32 %v794, 0.0
        %v811 = vmax.f32 %v795, 0.0
        %v812 = vmax.f32 %v796, 0.0
        %v813 = vmax.f32 %v797, 0.0
        %v814 = vmax.f32 %v798, 0.0
        %v815 = vmax.f32 %v799, 0.0
        %v816 = vmax.f32 %v800, 0.0
        %v817 = vmax.f32 %v801, 0.0
        %v818 = vmax.f32 %v802, 0.0
        %v819 = vmax.f32 %v803, 0.0
        %v820 = vmax.f32 %v804, 0.0
        %v821 = vmax.f32 %v805, 0.0
        %v822 = vmax.f32 %v806, 0.0
        %v823 = vmax.f32 %v807, 0.0
        %v824 = vld [vmem:[%s4] sm:$0xff]
        %v825 = vld [vmem:[%s4 + $0x8] sm:$0xff]
        %v826 = vld [vmem:[%s4 + $0x10] sm:$0xff]
        %v827 = vld [vmem:[%s4 + $0x18] sm:$0xff]
        %v828 = vld [vmem:[%s5] sm:$0x1]
        %v830 = vlaneseq
        %v831 = vshrl.u32 %v830, 7
        %v832 = vsub.s32 0, %v831
        %v833 = vrot.slane %v828, %v832
        %vm835 = vcmask 261120
        %v837 = vsel %vm835, %v808, 0
        %v840 = vsel %vm835, %v809, 0
        %v843 = vsel %vm835, %v810, 0
        %v846 = vsel %vm835, %v811, 0
        %v849 = vsel %vm835, %v812, 0
        %v852 = vsel %vm835, %v813, 0
        %v855 = vsel %vm835, %v814, 0
        %v858 = vsel %vm835, %v815, 0
        %v861 = vsel %vm835, %v816, 0
        %v864 = vsel %vm835, %v817, 0
        %v867 = vsel %vm835, %v818, 0
        %v870 = vsel %vm835, %v819, 0
        %v873 = vsel %vm835, %v820, 0
        %v876 = vsel %vm835, %v821, 0
        %v879 = vsel %vm835, %v822, 0
        %v882 = vsel %vm835, %v823, 0
        %884 = vmatprep.subr.mxu0 0.0
        %885 = vmatpush1.msra.mxu0 0.0
        %886 = vmatprep.subr.mxu0 0.0
        %887 = vmatpush1.msra.mxu0 0.0
        %888 = vmatprep.subr.mxu0 0.0
        %889 = vmatpush1.msra.mxu0 0.0
        %890 = vmatprep.subr.mxu0 0.0
        %891 = vmatpush1.msra.mxu0 0.0
        %892 = vmatprep.subr.mxu0 0.0
        %893 = vmatpush1.msra.mxu0 0.0
        %894 = vmatprep.subr.mxu0 0.0
        %895 = vmatpush1.msra.mxu0 0.0
        %896 = vmatprep.subr.mxu0 0.0
        %897 = vmatpush1.msra.mxu0 0.0
        %898 = vmatprep.subr.mxu0 0.0
        %899 = vmatpush1.msra.mxu0 0.0
        %900 = vmatprep.subr.mxu0 0.0
        %901 = vmatpush1.msra.mxu0 0.0
        %902 = vmatprep.subr.mxu0 0.0
        %903 = vmatpush1.msra.mxu0 0.0
        %904 = vmatprep.subr.mxu0 0.0
        %905 = vmatpush1.msra.mxu0 0.0
        %906 = vmatprep.subr.mxu0 0.0
        %907 = vmatpush1.msra.mxu0 0.0
        %908 = vmatprep.subr.mxu0 0.0
        %909 = vmatpush1.msra.mxu0 %v827
        %910 = vmatprep.subr.mxu0 0.0
        %911 = vmatpush1.msra.mxu0 %v826
        %912 = vmatprep.subr.mxu0 0.0
        %913 = vmatpush1.msra.mxu0 %v825
        %914 = vmatprep.subr.mxu0 0.0
        %915 = vmatpush1.msra.mxu0 %v824
        %916 = vmatprep.subr.mxu0 0.0
        %917 = vmatpush2.msra.mxu0 0.0
        %918 = vmatprep.subr.mxu0 0.0
        %919 = vmatpush2.msra.mxu0 0.0
        %920 = vmatprep.subr.mxu0 0.0
        %921 = vmatpush2.msra.mxu0 0.0
        %922 = vmatprep.subr.mxu0 0.0
        %923 = vmatpush2.msra.mxu0 0.0
        %924 = vmatprep.subr.mxu0 0.0
        %925 = vmatpush2.msra.mxu0 0.0
        %926 = vmatprep.subr.mxu0 0.0
        %927 = vmatpush2.msra.mxu0 0.0
        %928 = vmatprep.subr.mxu0 0.0
        %929 = vmatpush2.msra.mxu0 0.0
        %930 = vmatprep.subr.mxu0 0.0
        %931 = vmatpush2.msra.mxu0 0.0
        %932 = vmatprep.subr.mxu0 0.0
        %933 = vmatpush2.msra.mxu0 0.0
        %934 = vmatprep.subr.mxu0 0.0
        %935 = vmatpush2.msra.mxu0 0.0
        %936 = vmatprep.subr.mxu0 0.0
        %937 = vmatpush2.msra.mxu0 0.0
        %938 = vmatprep.subr.mxu0 0.0
        %939 = vmatpush2.msra.mxu0 0.0
        %940 = vmatprep.subr.mxu0 0.0
        %941 = vmatpush2.msra.mxu0 0.0
        %942 = vmatprep.subr.mxu0 0.0
        %943 = vmatpush2.msra.mxu0 0.0
        %944 = vmatprep.subr.mxu0 0.0
        %945 = vmatpush2.msra.mxu0 0.0
        %946 = vmatprep.subr.mxu0 0.0
        %947 = vmatpush2.msra.mxu0 0.0
        %948 = vmatprep.mubr.f32.mxu0 0.0
        %949 = vmatmul.mubr.f32.gmra.mxu0 %v837
        %v950 = vpop.f32.mrf.mxu0
        %v951 = vadd.f32 %v833, %v950
        %v952 = vpop.f32.mrf.mxu0
        %953 = vmatprep.mubr.f32.mxu0 0.0
        %954 = vmatmul.mubr.f32.gmra.mxu0 %v840
        %v955 = vpop.f32.mrf.mxu0
        %v956 = vadd.f32 %v833, %v955
        %v957 = vpop.f32.mrf.mxu0
        %958 = vmatprep.mubr.f32.mxu0 0.0
        %959 = vmatmul.mubr.f32.gmra.mxu0 %v843
        %v960 = vpop.f32.mrf.mxu0
        %v961 = vadd.f32 %v833, %v960
        %v962 = vpop.f32.mrf.mxu0
        %963 = vmatprep.mubr.f32.mxu0 0.0
        %964 = vmatmul.mubr.f32.gmra.mxu0 %v846
        %v965 = vpop.f32.mrf.mxu0
        %v966 = vadd.f32 %v833, %v965
        %v967 = vpop.f32.mrf.mxu0
        %968 = vmatprep.mubr.f32.mxu0 0.0
        %969 = vmatmul.mubr.f32.gmra.mxu0 %v849
        %v970 = vpop.f32.mrf.mxu0
        %v971 = vadd.f32 %v833, %v970
        %v972 = vpop.f32.mrf.mxu0
        %973 = vmatprep.mubr.f32.mxu0 0.0
        %974 = vmatmul.mubr.f32.gmra.mxu0 %v852
        %v975 = vpop.f32.mrf.mxu0
        %v976 = vadd.f32 %v833, %v975
        %v977 = vpop.f32.mrf.mxu0
        %978 = vmatprep.mubr.f32.mxu0 0.0
        %979 = vmatmul.mubr.f32.gmra.mxu0 %v855
        %v980 = vpop.f32.mrf.mxu0
        %v981 = vadd.f32 %v833, %v980
        %v982 = vpop.f32.mrf.mxu0
        %983 = vmatprep.mubr.f32.mxu0 0.0
        %984 = vmatmul.mubr.f32.gmra.mxu0 %v858
        %v985 = vpop.f32.mrf.mxu0
        %v986 = vadd.f32 %v833, %v985
        %v987 = vpop.f32.mrf.mxu0
        %988 = vmatprep.mubr.f32.mxu0 0.0
        %989 = vmatmul.mubr.f32.gmra.mxu0 %v861
        %v990 = vpop.f32.mrf.mxu0
        %v991 = vadd.f32 %v833, %v990
        %v992 = vpop.f32.mrf.mxu0
        %993 = vmatprep.mubr.f32.mxu0 0.0
        %994 = vmatmul.mubr.f32.gmra.mxu0 %v864
        %v995 = vpop.f32.mrf.mxu0
        %v996 = vadd.f32 %v833, %v995
        %v997 = vpop.f32.mrf.mxu0
        %998 = vmatprep.mubr.f32.mxu0 0.0
        %999 = vmatmul.mubr.f32.gmra.mxu0 %v867
        %v1000 = vpop.f32.mrf.mxu0
        %v1001 = vadd.f32 %v833, %v1000
        %v1002 = vpop.f32.mrf.mxu0
        %1003 = vmatprep.mubr.f32.mxu0 0.0
        %1004 = vmatmul.mubr.f32.gmra.mxu0 %v870
        %v1005 = vpop.f32.mrf.mxu0
        %v1006 = vadd.f32 %v833, %v1005
        %v1007 = vpop.f32.mrf.mxu0
        %1008 = vmatprep.mubr.f32.mxu0 0.0
        %1009 = vmatmul.mubr.f32.gmra.mxu0 %v873
        %v1010 = vpop.f32.mrf.mxu0
        %v1011 = vadd.f32 %v833, %v1010
        %v1012 = vpop.f32.mrf.mxu0
        %1013 = vmatprep.mubr.f32.mxu0 0.0
        %1014 = vmatmul.mubr.f32.gmra.mxu0 %v876
        %v1015 = vpop.f32.mrf.mxu0
        %v1016 = vadd.f32 %v833, %v1015
        %v1017 = vpop.f32.mrf.mxu0
        %1018 = vmatprep.mubr.f32.mxu0 0.0
        %1019 = vmatmul.mubr.f32.gmra.mxu0 %v879
        %v1020 = vpop.f32.mrf.mxu0
        %v1021 = vadd.f32 %v833, %v1020
        %v1022 = vpop.f32.mrf.mxu0
        %1023 = vmatprep.mubr.f32.mxu0 0.0
        %1024 = vmatmul.mubr.f32.gmra.mxu0 %v882
        %v1025 = vpop.f32.mrf.mxu0
        %v1026 = vadd.f32 %v833, %v1025
        %v1027 = vpop.f32.mrf.mxu0
        %1028 = vdwg.mxu0
        %v1029 = vmul.f32 %v951, %v951
        %v1030 = vmul.f32 %v956, %v956
        %v1031 = vmul.f32 %v961, %v961
        %v1032 = vmul.f32 %v966, %v966
        %v1033 = vmul.f32 %v971, %v971
        %v1034 = vmul.f32 %v976, %v976
        %v1035 = vmul.f32 %v981, %v981
        %v1036 = vmul.f32 %v986, %v986
        %v1037 = vmul.f32 %v991, %v991
        %v1038 = vmul.f32 %v996, %v996
        %v1039 = vmul.f32 %v1001, %v1001
        %v1040 = vmul.f32 %v1006, %v1006
        %v1041 = vmul.f32 %v1011, %v1011
        %v1042 = vmul.f32 %v1016, %v1016
        %v1043 = vmul.f32 %v1021, %v1021
        %v1044 = vmul.f32 %v1026, %v1026
        %vm1045 = vcmask 31744
        %v1046 = vsel %vm1045, %v1029, 0.0
        %1047 = vadd.xlane.f32.xlu0 %v1046
        %v1048 = vpop.xlane.xlu0 %1047
        %v1049 = vsel %vm1045, %v1030, 0.0
        %1050 = vadd.xlane.f32.xlu0 %v1049
        %v1051 = vpop.xlane.xlu0 %1050
        %v1052 = vsel %vm1045, %v1031, 0.0
        %1053 = vadd.xlane.f32.xlu0 %v1052
        %v1054 = vpop.xlane.xlu0 %1053
        %v1055 = vsel %vm1045, %v1032, 0.0
        %1056 = vadd.xlane.f32.xlu0 %v1055
        %v1057 = vpop.xlane.xlu0 %1056
        %v1058 = vsel %vm1045, %v1033, 0.0
        %1059 = vadd.xlane.f32.xlu0 %v1058
        %v1060 = vpop.xlane.xlu0 %1059
        %v1061 = vsel %vm1045, %v1034, 0.0
        %1062 = vadd.xlane.f32.xlu0 %v1061
        %v1063 = vpop.xlane.xlu0 %1062
        %v1064 = vsel %vm1045, %v1035, 0.0
        %1065 = vadd.xlane.f32.xlu0 %v1064
        %v1066 = vpop.xlane.xlu0 %1065
        %v1067 = vsel %vm1045, %v1036, 0.0
        %1068 = vadd.xlane.f32.xlu0 %v1067
        %v1069 = vpop.xlane.xlu0 %1068
        %v1070 = vsel %vm1045, %v1037, 0.0
        %1071 = vadd.xlane.f32.xlu0 %v1070
        %v1072 = vpop.xlane.xlu0 %1071
        %v1073 = vsel %vm1045, %v1038, 0.0
        %1074 = vadd.xlane.f32.xlu0 %v1073
        %v1075 = vpop.xlane.xlu0 %1074
        %v1076 = vsel %vm1045, %v1039, 0.0
        %1077 = vadd.xlane.f32.xlu0 %v1076
        %v1078 = vpop.xlane.xlu0 %1077
        %v1079 = vsel %vm1045, %v1040, 0.0
        %1080 = vadd.xlane.f32.xlu0 %v1079
        %v1081 = vpop.xlane.xlu0 %1080
        %v1082 = vsel %vm1045, %v1041, 0.0
        %1083 = vadd.xlane.f32.xlu0 %v1082
        %v1084 = vpop.xlane.xlu0 %1083
        %v1085 = vsel %vm1045, %v1042, 0.0
        %1086 = vadd.xlane.f32.xlu0 %v1085
        %v1087 = vpop.xlane.xlu0 %1086
        %v1088 = vsel %vm1045, %v1043, 0.0
        %1089 = vadd.xlane.f32.xlu0 %v1088
        %v1090 = vpop.xlane.xlu0 %1089
        %v1091 = vsel %vm1045, %v1044, 0.0
        %1092 = vadd.xlane.f32.xlu0 %v1091
        %v1093 = vpop.xlane.xlu0 %1092
        %s1094 = smul.u32 %s18, 128
        %v1095 = vlaneseq
        %v1096 = vshrl.u32 %v1095, 7
        %v1097 = vadd.s32 %v1096, 8
        %v1098 = vadd.s32 %v1096, 16
        %v1099 = vadd.s32 %v1096, 24
        %v1100 = vadd.s32 %v1096, 32
        %v1101 = vadd.s32 %v1096, 40
        %v1102 = vadd.s32 %v1096, 48
        %v1103 = vadd.s32 %v1096, 56
        %v1104 = vadd.s32 %v1096, 64
        %v1105 = vadd.s32 %v1096, 72
        %v1106 = vadd.s32 %v1096, 80
        %v1107 = vadd.s32 %v1096, 88
        %v1108 = vadd.s32 %v1096, 96
        %v1109 = vadd.s32 %v1096, 104
        %v1110 = vadd.s32 %v1096, 112
        %v1111 = vadd.s32 %v1096, 120
        %v1112 = vstv %s1094
        %v1113 = vadd.s32 %v1112, %v1096
        %v1114 = vadd.s32 %v1112, %v1097
        %v1115 = vadd.s32 %v1112, %v1098
        %v1116 = vadd.s32 %v1112, %v1099
        %v1117 = vadd.s32 %v1112, %v1100
        %v1118 = vadd.s32 %v1112, %v1101
        %v1119 = vadd.s32 %v1112, %v1102
        %v1120 = vadd.s32 %v1112, %v1103
        %v1121 = vadd.s32 %v1112, %v1104
        %v1122 = vadd.s32 %v1112, %v1105
        %v1123 = vadd.s32 %v1112, %v1106
        %v1124 = vadd.s32 %v1112, %v1107
        %v1125 = vadd.s32 %v1112, %v1108
        %v1126 = vadd.s32 %v1112, %v1109
        %v1127 = vadd.s32 %v1112, %v1110
        %v1128 = vadd.s32 %v1112, %v1111
        %vm1129 = vcmp.lt.s32.totalorder %v1113, 200
        %vm1130 = vcmp.lt.s32.totalorder %v1114, 200
        %vm1131 = vcmp.lt.s32.totalorder %v1115, 200
        %vm1132 = vcmp.lt.s32.totalorder %v1116, 200
        %vm1133 = vcmp.lt.s32.totalorder %v1117, 200
        %vm1134 = vcmp.lt.s32.totalorder %v1118, 200
        %vm1135 = vcmp.lt.s32.totalorder %v1119, 200
        %vm1136 = vcmp.lt.s32.totalorder %v1120, 200
        %vm1137 = vcmp.lt.s32.totalorder %v1121, 200
        %vm1138 = vcmp.lt.s32.totalorder %v1122, 200
        %vm1139 = vcmp.lt.s32.totalorder %v1123, 200
        %vm1140 = vcmp.lt.s32.totalorder %v1124, 200
        %vm1141 = vcmp.lt.s32.totalorder %v1125, 200
        %vm1142 = vcmp.lt.s32.totalorder %v1126, 200
        %vm1143 = vcmp.lt.s32.totalorder %v1127, 200
        %vm1144 = vcmp.lt.s32.totalorder %v1128, 200
        %v1145 = vadd.f32 %v1048, %v438
        %v1146 = vadd.f32 %v1051, %v439
        %v1147 = vadd.f32 %v1054, %v440
        %v1148 = vadd.f32 %v1057, %v441
        %v1149 = vadd.f32 %v1060, %v442
        %v1150 = vadd.f32 %v1063, %v443
        %v1151 = vadd.f32 %v1066, %v444
        %v1152 = vadd.f32 %v1069, %v445
        %v1153 = vadd.f32 %v1072, %v446
        %v1154 = vadd.f32 %v1075, %v447
        %v1155 = vadd.f32 %v1078, %v448
        %v1156 = vadd.f32 %v1081, %v449
        %v1157 = vadd.f32 %v1084, %v450
        %v1158 = vadd.f32 %v1087, %v451
        %v1159 = vadd.f32 %v1090, %v452
        %v1160 = vadd.f32 %v1093, %v453
        %v1161 = vsel %vm1129, %v1145, 0.0
        %v1162 = vsel %vm1130, %v1146, 0.0
        %v1163 = vsel %vm1131, %v1147, 0.0
        %v1164 = vsel %vm1132, %v1148, 0.0
        %v1165 = vsel %vm1133, %v1149, 0.0
        %v1166 = vsel %vm1134, %v1150, 0.0
        %v1167 = vsel %vm1135, %v1151, 0.0
        %v1168 = vsel %vm1136, %v1152, 0.0
        %v1169 = vsel %vm1137, %v1153, 0.0
        %v1170 = vsel %vm1138, %v1154, 0.0
        %v1171 = vsel %vm1139, %v1155, 0.0
        %v1172 = vsel %vm1140, %v1156, 0.0
        %v1173 = vsel %vm1141, %v1157, 0.0
        %v1174 = vsel %vm1142, %v1158, 0.0
        %v1175 = vsel %vm1143, %v1159, 0.0
        %v1176 = vsel %vm1144, %v1160, 0.0
        %v1177 = vld [vmem:[#allocation2] sm:$0x1]
        %1194 = vrot.lane.b32.xlu0 %v1161, 120
        %v1195 = vpop.permute.xlu0 %1194
        %1196 = vrot.lane.b32.xlu0 %v1162, 120
        %v1197 = vpop.permute.xlu0 %1196
        %1198 = vrot.lane.b32.xlu0 %v1163, 120
        %v1199 = vpop.permute.xlu0 %1198
        %1200 = vrot.lane.b32.xlu0 %v1164, 120
        %v1201 = vpop.permute.xlu0 %1200
        %1202 = vrot.lane.b32.xlu0 %v1165, 120
        %v1203 = vpop.permute.xlu0 %1202
        %1204 = vrot.lane.b32.xlu0 %v1166, 120
        %v1205 = vpop.permute.xlu0 %1204
        %1206 = vrot.lane.b32.xlu0 %v1167, 120
        %v1207 = vpop.permute.xlu0 %1206
        %1208 = vrot.lane.b32.xlu0 %v1168, 120
        %v1209 = vpop.permute.xlu0 %1208
        %1210 = vrot.lane.b32.xlu0 %v1169, 120
        %v1211 = vpop.permute.xlu0 %1210
        %1212 = vrot.lane.b32.xlu0 %v1170, 120
        %v1213 = vpop.permute.xlu0 %1212
        %1214 = vrot.lane.b32.xlu0 %v1171, 120
        %v1215 = vpop.permute.xlu0 %1214
        %1216 = vrot.lane.b32.xlu0 %v1172, 120
        %v1217 = vpop.permute.xlu0 %1216
        %1218 = vrot.lane.b32.xlu0 %v1173, 120
        %v1219 = vpop.permute.xlu0 %1218
        %1220 = vrot.lane.b32.xlu0 %v1174, 120
        %v1221 = vpop.permute.xlu0 %1220
        %1222 = vrot.lane.b32.xlu0 %v1175, 120
        %v1223 = vpop.permute.xlu0 %1222
        %1224 = vrot.lane.b32.xlu0 %v1176, 120
        %v1225 = vpop.permute.xlu0 %1224
        %vm1242 = vcmask 7168
        %v1243 = vsel %vm1242, %v1195, 0.0
        %v1244 = vsel %vm1242, %v1197, 0.0
        %v1245 = vadd.f32 %v1243, %v1244
        %v1246 = vsel %vm1242, %v1199, 0.0
        %v1247 = vadd.f32 %v1245, %v1246
        %v1248 = vsel %vm1242, %v1201, 0.0
        %v1249 = vadd.f32 %v1247, %v1248
        %v1250 = vsel %vm1242, %v1203, 0.0
        %v1251 = vadd.f32 %v1249, %v1250
        %v1252 = vsel %vm1242, %v1205, 0.0
        %v1253 = vadd.f32 %v1251, %v1252
        %v1254 = vsel %vm1242, %v1207, 0.0
        %v1255 = vadd.f32 %v1253, %v1254
        %v1256 = vsel %vm1242, %v1209, 0.0
        %v1257 = vadd.f32 %v1255, %v1256
        %v1258 = vsel %vm1242, %v1211, 0.0
        %v1259 = vadd.f32 %v1257, %v1258
        %v1260 = vsel %vm1242, %v1213, 0.0
        %v1261 = vadd.f32 %v1259, %v1260
        %v1262 = vsel %vm1242, %v1215, 0.0
        %v1263 = vadd.f32 %v1261, %v1262
        %v1264 = vsel %vm1242, %v1217, 0.0
        %v1265 = vadd.f32 %v1263, %v1264
        %v1266 = vsel %vm1242, %v1219, 0.0
        %v1267 = vadd.f32 %v1265, %v1266
        %v1268 = vsel %vm1242, %v1221, 0.0
        %v1269 = vadd.f32 %v1267, %v1268
        %v1270 = vsel %vm1242, %v1223, 0.0
        %v1271 = vadd.f32 %v1269, %v1270
        %v1272 = vsel %vm1242, %v1225, 0.0
        %v1273 = vadd.f32 %v1271, %v1272
        %1274 = vadd.xlane.f32.xlu0 %v1273
        %v1275 = vpop.xlane.xlu0 %1274
        %v1276 = vrot.slane %v1275, 4
        %v1277 = vadd.f32 %v1275, %v1276
        %v1278 = vrot.slane %v1277, 2
        %v1279 = vadd.f32 %v1277, %v1278
        %v1280 = vrot.slane %v1279, 1
        %v1281 = vadd.f32 %v1279, %v1280
        %s1282 = vtos %v1281
        %v1283 = vstv %s1282
        %v1284 = vadd.f32 %v1177, %v1283
        %vm1285 = vcmask 0
        %1286 = vst.msk [vmem:[#allocation2] sm:$0x1] %vm1285, %v1284
        %p1287 = scmp.eq.s32.totalorder %s18, 1
        // Predicated region
        $region49: #{learned_cost_model_loss.1} parent=43 // pred_check
          %p1288 = pneg %p1287
        $region50: #{learned_cost_model_loss.1} parent=43 // pred_check_branch
          %1290 = sbr.rel (%p1288) target = $region52
        $region51: #{learned_cost_model_loss.1} parent=43 // pred_region
          %v1291 = vld [vmem:[#allocation2] sm:$0x1]
          %v1292 = vmul.f32 %v1291, 0.005
          %1293 = vst.msk [vmem:[#allocation2] sm:$0x1] %vm1285, %v1292
        $region52: #{learned_cost_model_loss.1} parent=43 // pred_fallthru
          _
        // Predicated region
        $region53: #{learned_cost_model_loss.1} parent=43 // pred_check
          %p1294 = pneg %p162
        $region54: #{learned_cost_model_loss.1} parent=43 // pred_check_branch
          %1296 = sbr.rel (%p1294) target = $region56
        $region55: #{learned_cost_model_loss.1} parent=43 // pred_region
          %s1298 = ssub.s32 16, 16
          %1299 = vsyncadd [#allocation3], %s1298
          %s1301 = sshll.u32 [#allocation2], 4
          %s1302 = int_to_ptr.vmem [resolvable:$true] %s1301
          %1304 = dma.vmem_to_hbm [thread:$0]  %s1302, 16, %s6, [#allocation3]
        $region56: #{learned_cost_model_loss.1} parent=43 // pred_fallthru
          _
        // Predicated region
        $region57: #{learned_cost_model_loss.1} parent=43 // pred_check
          %p1305 = pneg %p162
        $region58: #{learned_cost_model_loss.1} parent=43 // pred_check_branch
          %1307 = sbr.rel (%p1305) target = $region60
        $region59: #{learned_cost_model_loss.1} parent=43 // pred_region
          %1308 = dma.done [#allocation3], 16
        $region60: #{learned_cost_model_loss.1} parent=43 // pred_fallthru
          _
      $region44: #{learned_cost_model_loss.1} parent=5 // pred_fallthru
        _
      %p1309 = scmp.le.s32.totalorder 2, %s13
      // Predicated region
      $region61: #{learned_cost_model_loss.1} parent=5 // pred_check
        %p1310 = pneg %p1309
      $region62: #{learned_cost_model_loss.1} parent=5 // pred_check_branch
        %1312 = sbr.rel (%p1310) target = $region64
      $region63: #{learned_cost_model_loss.1} parent=5 // pred_region
        %s1313 = ssub.s32 %s13, 2
      $region64: #{learned_cost_model_loss.1} parent=5 // pred_fallthru
        _
    $region6: #{learned_cost_model_loss.1} parent=1 // loop_footer
      %s17 = sadd.s32 1, %s13
    $region7: #{learned_cost_model_loss.1} parent=1 // loop_footer_branch
      %12 = sbr.rel target = $region3
    $region8: #{learned_cost_model_loss.1} parent=1 // loop_exit
      _
    %1314 = vsyncpa [#allocation3], 1
    %s1315 = scalar_lea.sflag [#allocation3], 1
    %1316 = vsyncpa %s1315, 1

</llo_original>
